<compile_context>
chip_gen: v7x
topology: tpu7x:2x2x1
jax: 0.10.0
libtpu: 0.0.40
codegen_flags: <defaults>
</compile_context>

<pallas_src>
import functools

import jax
import jax.numpy as jnp
import numpy as np
from jax.experimental import pallas as pl
from jax.experimental.pallas import tpu as pltpu


def _round_up(x, m):
    return ((x + m - 1) // m) * m


def _residual_mlp_kernel(x_ref, w1t_ref, b1_ref, w2t_ref, b2_ref, o_ref, *,
                         hid_chunk):
    # Shapes (lane-dense: spatial tile on the lane axis):
    #   x_ref  : (C, TS)      input tile, native dtype (MXU operand)
    #   w1t_ref: (hid, C)     first Linear, pre-transposed   (h = w1t @ x)
    #   b1_ref : (hid, 1)
    #   w2t_ref: (C, hid)     second Linear, pre-transposed  (y = w2t @ h)
    #   b2_ref : (C, 1)
    #   o_ref  : (C, TS)
    x = x_ref[...]                                    # keep native dtype for the MXU
    hid = w1t_ref.shape[0]
    acc = jnp.zeros(o_ref.shape, jnp.float32)         # f32 accumulator (C, TS)

    # Static chunking over the hidden dim keeps the f32 (chunk, TS) GELU
    # activation small when hid is large; collapses to a single pass here.
    for c0 in range(0, hid, hid_chunk):
        c1 = min(c0 + hid_chunk, hid)
        h = jnp.dot(w1t_ref[c0:c1, :], x,
                    preferred_element_type=jnp.float32)
        h = jax.nn.gelu(h + b1_ref[c0:c1, :].astype(jnp.float32))
        acc = acc + jnp.dot(w2t_ref[:, c0:c1], h.astype(w2t_ref.dtype),
                            preferred_element_type=jnp.float32)

    y = acc + b2_ref[...].astype(jnp.float32) + x.astype(jnp.float32)
    o_ref[...] = y.astype(o_ref.dtype)                # fused residual add


def _build_residual_call(B, C, HWp, hid, tile_s, dtype, single_buffer_weights,
                         hid_chunk):
    n_s = HWp // tile_s

    weight_kwargs = {}
    if single_buffer_weights:
        # Grid-invariant weights do not need double-buffering (VMEM budget).
        weight_kwargs = dict(pipeline_mode=pl.Buffered(buffer_count=1))

    def w_spec(shape):
        return pl.BlockSpec(shape, lambda b, s: (0, 0), **weight_kwargs)

    kernel = functools.partial(_residual_mlp_kernel, hid_chunk=hid_chunk)

    return pl.pallas_call(
        kernel,
        out_shape=jax.ShapeDtypeStruct((B, C, HWp), dtype),
        grid_spec=pltpu.PrefetchScalarGridSpec(
            num_scalar_prefetch=0,
            grid=(B, n_s),
            in_specs=[
                # x tile: batch squeezed, channels on sublanes, spatial on lanes
                pl.BlockSpec((None, C, tile_s), lambda b, s: (b, 0, s)),
                w_spec((hid, C)),     # w1^T (grid-invariant, resident)
                w_spec((hid, 1)),     # b1
                w_spec((C, hid)),     # w2^T (grid-invariant, resident)
                w_spec((C, 1)),       # b2
            ],
            out_specs=pl.BlockSpec((None, C, tile_s), lambda b, s: (b, 0, s)),
        ),
        compiler_params=pltpu.CompilerParams(
            dimension_semantics=("parallel", "parallel"),
            vmem_limit_bytes=32 * 1024 * 1024,   # raise v5e's 16 MiB default
        ),
    )


def residual_forward(x_nchw, w1, b1, w2, b2, *, spatial_tile=1024,
                     hid_chunk=2048):
    """y = fn(x) + x  with fn = Linear(C->hid) -> GELU -> Linear(hid->C)."""
    B, C, H, W = x_nchw.shape
    hid = w1.shape[1]
    HW = H * W

    # Lane-dense spatial tile: multiple of 128, as large as sensible.
    tile_s = min(_round_up(HW, 128), _round_up(spatial_tile, 128))
    HWp = _round_up(HW, tile_s)

    # NCHW already has spatial on the fast axis -> metadata-only reshape,
    # no transposes (and none on the way back).
    x3d = x_nchw.reshape(B, C, HW)
    if HWp != HW:
        x3d = jnp.pad(x3d, ((0, 0), (0, 0), (0, HWp - HW)))

    # Pre-transpose the (tiny) weights once so the kernel computes w^T @ x.
    w1t = jnp.transpose(w1)            # (hid, C)
    w2t = jnp.transpose(w2)            # (C, hid)
    b1c = b1.reshape(hid, 1)
    b2c = b2.reshape(C, 1)

    try:
        call = _build_residual_call(B, C, HWp, hid, tile_s, x3d.dtype,
                                    True, hid_chunk)
        out3d = jax.block_until_ready(call(x3d, w1t, b1c, w2t, b2c))
    except Exception:
        # Fallback for JAX builds without pl.Buffered single-buffering support.
        call = _build_residual_call(B, C, HWp, hid, tile_s, x3d.dtype,
                                    False, hid_chunk)
        out3d = call(x3d, w1t, b1c, w2t, b2c)

    if HWp != HW:
        out3d = out3d[:, :, :HW]
    return out3d.reshape(B, C, H, W)


def _residual_ref(x_nchw, w1, b1, w2, b2):
    B, C, H, W = x_nchw.shape
    x2d = jnp.transpose(x_nchw, (0, 2, 3, 1)).reshape(-1, C).astype(jnp.float32)
    h = jax.nn.gelu(x2d @ w1.astype(jnp.float32) + b1.astype(jnp.float32))
    y = h @ w2.astype(jnp.float32) + b2.astype(jnp.float32) + x2d
    return jnp.transpose(y.reshape(B, H, W, C), (0, 3, 1, 2)).astype(x_nchw.dtype)


if __name__ == "__main__":
    key = jax.random.PRNGKey(0)
    k_x, k_w1, k_b1, k_w2, k_b2 = jax.random.split(key, 5)

    B, C, H, W = 2, 4, 16, 16      # NCHW, as in the PyTorch module
    hidden = 32

    x = jax.random.normal(k_x, (B, C, H, W), dtype=jnp.float32)
    w1 = jax.random.normal(k_w1, (C, hidden), dtype=jnp.float32) * 0.1
    b1 = jax.random.normal(k_b1, (hidden,), dtype=jnp.float32) * 0.01
    w2 = jax.random.normal(k_w2, (hidden, C), dtype=jnp.float32) * 0.1
    b2 = jax.random.normal(k_b2, (C,), dtype=jnp.float32) * 0.01

    out = jax.block_until_ready(residual_forward(x, w1, b1, w2, b2))
    ref = jax.block_until_ready(_residual_ref(x, w1, b1, w2, b2))
    np.testing.assert_allclose(np.asarray(out), np.asarray(ref),
                               rtol=1e-4, atol=1e-4)
    print("KERNEL_OK")
</pallas_src>

<mosaic_0001>
module attributes {stable_mosaic.version = 11 : i64} {
  func.func @_residual_mlp_kernel(%arg0: i32, %arg1: i32, %arg2: memref<1x4x256xf32, #tpu.memory_space<vmem>>, %arg3: memref<32x4xf32, #tpu.memory_space<vmem>>, %arg4: memref<32x1xf32, #tpu.memory_space<vmem>>, %arg5: memref<4x32xf32, #tpu.memory_space<vmem>>, %arg6: memref<4x1xf32, #tpu.memory_space<vmem>>, %arg7: memref<1x4x256xf32, #tpu.memory_space<vmem>>) attributes {dimension_semantics = [#tpu.dimension_semantics<parallel>, #tpu.dimension_semantics<parallel>], iteration_bounds = array<i64: 2, 1>, scalar_prefetch = 0 : i64, scratch_operands = 0 : i64, tpu.core_type = #tpu.core_type<tc>, window_params = [{transform_indices = @transform_0, window_bounds = array<i64: 1, 4, 256>}, {pipeline_mode = #tpu.pipeline_mode<synchronous>, transform_indices = @transform_1, window_bounds = array<i64: 32, 4>}, {pipeline_mode = #tpu.pipeline_mode<synchronous>, transform_indices = @transform_2, window_bounds = array<i64: 32, 1>}, {pipeline_mode = #tpu.pipeline_mode<synchronous>, transform_indices = @transform_3, window_bounds = array<i64: 4, 32>}, {pipeline_mode = #tpu.pipeline_mode<synchronous>, transform_indices = @transform_4, window_bounds = array<i64: 4, 1>}, {transform_indices = @transform_5, window_bounds = array<i64: 1, 4, 256>}]} {
    %c0 = arith.constant 0 : index
    %c0_0 = arith.constant 0 : index
    %c0_1 = arith.constant 0 : index
    %0 = vector.load %arg2[%c0, %c0_0, %c0_1] : memref<1x4x256xf32, #tpu.memory_space<vmem>>, vector<1x4x256xf32>
    %1 = vector.shape_cast %0 : vector<1x4x256xf32> to vector<4x256xf32>
    %cst = arith.constant 0.000000e+00 : f32
    %2 = vector.broadcast %cst : f32 to vector<4x256xf32>
    %c0_2 = arith.constant 0 : index
    %c0_3 = arith.constant 0 : index
    %3 = vector.load %arg3[%c0_2, %c0_3] : memref<32x4xf32, #tpu.memory_space<vmem>>, vector<32x4xf32>
    %cst_4 = arith.constant dense<0.000000e+00> : vector<32x256xf32>
    %4 = tpu.matmul %3, %1, %cst_4 {dimension_numbers = #tpu.dot_dimension_numbers<[1], [0], [0], [1], [0, 0, 1, 1], [], []>} : vector<32x4xf32>, vector<4x256xf32>, vector<32x256xf32> -> vector<32x256xf32>
    %c0_5 = arith.constant 0 : index
    %c0_6 = arith.constant 0 : index
    %5 = vector.load %arg4[%c0_5, %c0_6] : memref<32x1xf32, #tpu.memory_space<vmem>>, vector<32x1xf32>
    %6 = vector.broadcast %5 : vector<32x1xf32> to vector<32x256xf32>
    %7 = arith.addf %4, %6 : vector<32x256xf32>
    %8 = arith.mulf %7, %7 : vector<32x256xf32>
    %9 = arith.mulf %7, %8 : vector<32x256xf32>
    %cst_7 = arith.constant 4.471500e-02 : f32
    %10 = vector.broadcast %cst_7 : f32 to vector<32x256xf32>
    %11 = arith.mulf %10, %9 : vector<32x256xf32>
    %12 = arith.addf %7, %11 : vector<32x256xf32>
    %cst_8 = arith.constant 0.797884583 : f32
    %13 = vector.broadcast %cst_8 : f32 to vector<32x256xf32>
    %14 = arith.mulf %13, %12 : vector<32x256xf32>
    %15 = math.tanh %14 : vector<32x256xf32>
    %cst_9 = arith.constant 1.000000e+00 : f32
    %16 = vector.broadcast %cst_9 : f32 to vector<32x256xf32>
    %17 = arith.addf %16, %15 : vector<32x256xf32>
    %cst_10 = arith.constant 5.000000e-01 : f32
    %18 = vector.broadcast %cst_10 : f32 to vector<32x256xf32>
    %19 = arith.mulf %18, %17 : vector<32x256xf32>
    %20 = arith.mulf %7, %19 : vector<32x256xf32>
    %c0_11 = arith.constant 0 : index
    %c0_12 = arith.constant 0 : index
    %21 = vector.load %arg5[%c0_11, %c0_12] : memref<4x32xf32, #tpu.memory_space<vmem>>, vector<4x32xf32>
    %cst_13 = arith.constant dense<0.000000e+00> : vector<4x256xf32>
    %22 = tpu.matmul %21, %20, %cst_13 {dimension_numbers = #tpu.dot_dimension_numbers<[1], [0], [0], [1], [0, 0, 1, 1], [], []>} : vector<4x32xf32>, vector<32x256xf32>, vector<4x256xf32> -> vector<4x256xf32>
    %23 = arith.addf %2, %22 : vector<4x256xf32>
    %c0_14 = arith.constant 0 : index
    %c0_15 = arith.constant 0 : index
    %24 = vector.load %arg6[%c0_14, %c0_15] : memref<4x1xf32, #tpu.memory_space<vmem>>, vector<4x1xf32>
    %25 = vector.broadcast %24 : vector<4x1xf32> to vector<4x256xf32>
    %26 = arith.addf %23, %25 : vector<4x256xf32>
    %27 = arith.addf %26, %1 : vector<4x256xf32>
    %c0_16 = arith.constant 0 : index
    %c0_17 = arith.constant 0 : index
    %c0_18 = arith.constant 0 : index
    %28 = vector.load %arg7[%c0_16, %c0_17, %c0_18] : memref<1x4x256xf32, #tpu.memory_space<vmem>>, vector<1x4x256xf32>
    %29 = vector.shape_cast %28 : vector<1x4x256xf32> to vector<4x256xf32>
    %30 = vector.shape_cast %27 : vector<4x256xf32> to vector<1x4x256xf32>
    tpu.vector_store %arg7[%c0_16, %c0_17, %c0_18], %30 {strides = array<i32>} : memref<1x4x256xf32, #tpu.memory_space<vmem>>, vector<1x4x256xf32>,
    return
  }
  func.func @transform_0(%arg0: i32, %arg1: i32) -> (i32, i32, i32) {
    %c0_i32 = arith.constant 0 : i32
    %c0_i32_0 = arith.constant 0 : i32
    return %arg0, %c0_i32, %arg1 : i32, i32, i32
  }
  func.func @transform_1(%arg0: i32, %arg1: i32) -> (i32, i32) {
    %c0_i32 = arith.constant 0 : i32
    %c0_i32_0 = arith.constant 0 : i32
    %c0_i32_1 = arith.constant 0 : i32
    return %c0_i32, %c0_i32_0 : i32, i32
  }
  func.func @transform_2(%arg0: i32, %arg1: i32) -> (i32, i32) {
    %c0_i32 = arith.constant 0 : i32
    %c0_i32_0 = arith.constant 0 : i32
    %c0_i32_1 = arith.constant 0 : i32
    return %c0_i32, %c0_i32_0 : i32, i32
  }
  func.func @transform_3(%arg0: i32, %arg1: i32) -> (i32, i32) {
    %c0_i32 = arith.constant 0 : i32
    %c0_i32_0 = arith.constant 0 : i32
    %c0_i32_1 = arith.constant 0 : i32
    return %c0_i32, %c0_i32_0 : i32, i32
  }
  func.func @transform_4(%arg0: i32, %arg1: i32) -> (i32, i32) {
    %c0_i32 = arith.constant 0 : i32
    %c0_i32_0 = arith.constant 0 : i32
    %c0_i32_1 = arith.constant 0 : i32
    return %c0_i32, %c0_i32_0 : i32, i32
  }
  func.func @transform_5(%arg0: i32, %arg1: i32) -> (i32, i32, i32) {
    %c0_i32 = arith.constant 0 : i32
    %c0_i32_0 = arith.constant 0 : i32
    return %arg0, %c0_i32, %arg1 : i32, i32, i32
  }
}

module attributes {stable_mosaic.version = 11 : i64} {
  func.func @_residual_mlp_kernel(%arg0: i32, %arg1: i32, %arg2: memref<1x4x256xf32, #tpu.memory_space<vmem>>, %arg3: memref<32x4xf32, #tpu.memory_space<vmem>>, %arg4: memref<32x1xf32, #tpu.memory_space<vmem>>, %arg5: memref<4x32xf32, #tpu.memory_space<vmem>>, %arg6: memref<4x1xf32, #tpu.memory_space<vmem>>, %arg7: memref<1x4x256xf32, #tpu.memory_space<vmem>>) attributes {dimension_semantics = [#tpu.dimension_semantics<parallel>, #tpu.dimension_semantics<parallel>], iteration_bounds = array<i64: 2, 1>, scalar_prefetch = 0 : i64, scratch_operands = 0 : i64, tpu.core_type = #tpu.core_type<tc>, window_params = [{transform_indices = @transform_0, window_bounds = array<i64: 1, 4, 256>}, {pipeline_mode = #tpu.pipeline_mode<synchronous>, transform_indices = @transform_1, window_bounds = array<i64: 32, 4>}, {pipeline_mode = #tpu.pipeline_mode<synchronous>, transform_indices = @transform_2, window_bounds = array<i64: 32, 1>}, {pipeline_mode = #tpu.pipeline_mode<synchronous>, transform_indices = @transform_3, window_bounds = array<i64: 4, 32>}, {pipeline_mode = #tpu.pipeline_mode<synchronous>, transform_indices = @transform_4, window_bounds = array<i64: 4, 1>}, {transform_indices = @transform_5, window_bounds = array<i64: 1, 4, 256>}]} {
    %c0 = arith.constant 0 : index
    %c0_0 = arith.constant 0 : index
    %c0_1 = arith.constant 0 : index
    %0 = vector.load %arg2[%c0, %c0_0, %c0_1] : memref<1x4x256xf32, #tpu.memory_space<vmem>>, vector<1x4x256xf32>
    %1 = vector.shape_cast %0 : vector<1x4x256xf32> to vector<4x256xf32>
    %cst = arith.constant 0.000000e+00 : f32
    %2 = vector.broadcast %cst : f32 to vector<4x256xf32>
    %c0_2 = arith.constant 0 : index
    %c0_3 = arith.constant 0 : index
    %3 = vector.load %arg3[%c0_2, %c0_3] : memref<32x4xf32, #tpu.memory_space<vmem>>, vector<32x4xf32>
    %cst_4 = arith.constant dense<0.000000e+00> : vector<32x256xf32>
    %4 = tpu.matmul %3, %1, %cst_4 {dimension_numbers = #tpu.dot_dimension_numbers<[1], [0], [0], [1], [0, 0, 1, 1], [], []>} : vector<32x4xf32>, vector<4x256xf32>, vector<32x256xf32> -> vector<32x256xf32>
    %c0_5 = arith.constant 0 : index
    %c0_6 = arith.constant 0 : index
    %5 = vector.load %arg4[%c0_5, %c0_6] : memref<32x1xf32, #tpu.memory_space<vmem>>, vector<32x1xf32>
    %6 = vector.broadcast %5 : vector<32x1xf32> to vector<32x256xf32>
    %7 = arith.addf %4, %6 : vector<32x256xf32>
    %8 = arith.mulf %7, %7 : vector<32x256xf32>
    %9 = arith.mulf %7, %8 : vector<32x256xf32>
    %cst_7 = arith.constant 4.471500e-02 : f32
    %10 = vector.broadcast %cst_7 : f32 to vector<32x256xf32>
    %11 = arith.mulf %10, %9 : vector<32x256xf32>
    %12 = arith.addf %7, %11 : vector<32x256xf32>
    %cst_8 = arith.constant 0.797884583 : f32
    %13 = vector.broadcast %cst_8 : f32 to vector<32x256xf32>
    %14 = arith.mulf %13, %12 : vector<32x256xf32>
    %15 = math.tanh %14 : vector<32x256xf32>
    %cst_9 = arith.constant 1.000000e+00 : f32
    %16 = vector.broadcast %cst_9 : f32 to vector<32x256xf32>
    %17 = arith.addf %16, %15 : vector<32x256xf32>
    %cst_10 = arith.constant 5.000000e-01 : f32
    %18 = vector.broadcast %cst_10 : f32 to vector<32x256xf32>
    %19 = arith.mulf %18, %17 : vector<32x256xf32>
    %20 = arith.mulf %7, %19 : vector<32x256xf32>
    %c0_11 = arith.constant 0 : index
    %c0_12 = arith.constant 0 : index
    %21 = vector.load %arg5[%c0_11, %c0_12] : memref<4x32xf32, #tpu.memory_space<vmem>>, vector<4x32xf32>
    %cst_13 = arith.constant dense<0.000000e+00> : vector<4x256xf32>
    %22 = tpu.matmul %21, %20, %cst_13 {dimension_numbers = #tpu.dot_dimension_numbers<[1], [0], [0], [1], [0, 0, 1, 1], [], []>} : vector<4x32xf32>, vector<32x256xf32>, vector<4x256xf32> -> vector<4x256xf32>
    %23 = arith.addf %2, %22 : vector<4x256xf32>
    %c0_14 = arith.constant 0 : index
    %c0_15 = arith.constant 0 : index
    %24 = vector.load %arg6[%c0_14, %c0_15] : memref<4x1xf32, #tpu.memory_space<vmem>>, vector<4x1xf32>
    %25 = vector.broadcast %24 : vector<4x1xf32> to vector<4x256xf32>
    %26 = arith.addf %23, %25 : vector<4x256xf32>
    %27 = arith.addf %26, %1 : vector<4x256xf32>
    %c0_16 = arith.constant 0 : index
    %c0_17 = arith.constant 0 : index
    %c0_18 = arith.constant 0 : index
    %28 = vector.load %arg7[%c0_16, %c0_17, %c0_18] : memref<1x4x256xf32, #tpu.memory_space<vmem>>, vector<1x4x256xf32>
    %29 = vector.shape_cast %28 : vector<1x4x256xf32> to vector<4x256xf32>
    %30 = vector.shape_cast %27 : vector<4x256xf32> to vector<1x4x256xf32>
    tpu.vector_store %arg7[%c0_16, %c0_17, %c0_18], %30 {strides = array<i32>} : memref<1x4x256xf32, #tpu.memory_space<vmem>>, vector<1x4x256xf32>,
    return
  }
  func.func @transform_0(%arg0: i32, %arg1: i32) -> (i32, i32, i32) {
    %c0_i32 = arith.constant 0 : i32
    %c0_i32_0 = arith.constant 0 : i32
    return %arg0, %c0_i32, %arg1 : i32, i32, i32
  }
  func.func @transform_1(%arg0: i32, %arg1: i32) -> (i32, i32) {
    %c0_i32 = arith.constant 0 : i32
    %c0_i32_0 = arith.constant 0 : i32
    %c0_i32_1 = arith.constant 0 : i32
    return %c0_i32, %c0_i32_0 : i32, i32
  }
  func.func @transform_2(%arg0: i32, %arg1: i32) -> (i32, i32) {
    %c0_i32 = arith.constant 0 : i32
    %c0_i32_0 = arith.constant 0 : i32
    %c0_i32_1 = arith.constant 0 : i32
    return %c0_i32, %c0_i32_0 : i32, i32
  }
  func.func @transform_3(%arg0: i32, %arg1: i32) -> (i32, i32) {
    %c0_i32 = arith.constant 0 : i32
    %c0_i32_0 = arith.constant 0 : i32
    %c0_i32_1 = arith.constant 0 : i32
    return %c0_i32, %c0_i32_0 : i32, i32
  }
  func.func @transform_4(%arg0: i32, %arg1: i32) -> (i32, i32) {
    %c0_i32 = arith.constant 0 : i32
    %c0_i32_0 = arith.constant 0 : i32
    %c0_i32_1 = arith.constant 0 : i32
    return %c0_i32, %c0_i32_0 : i32, i32
  }
  func.func @transform_5(%arg0: i32, %arg1: i32) -> (i32, i32, i32) {
    %c0_i32 = arith.constant 0 : i32
    %c0_i32_0 = arith.constant 0 : i32
    return %arg0, %c0_i32, %arg1 : i32, i32, i32
  }
}

</mosaic_0001>

<llo_original>
// kernel: tpu_custom_call.1
$region0: #{tpu_custom_call.1}
  #allocation0 [shape = 'u32[]', space=smem, size = 0x4, offset = 0x4, fixed_abs, tag = 'smem constant byte address 0x4 - core index']
  #allocation1 [shape = 'u32[144,128]{1,0:T(1,128)}', space=vmem, size = 0x12000, scoped, tag = 'internal scratch']
  %s0 = inlined_call_operand.vmem [shape: f32[2,4,256], index: 0, kind: input, shape index: {}]
  %s1 = inlined_call_operand.vmem [shape: f32[32,4], index: 1, kind: input, shape index: {}]
  %s2 = inlined_call_operand.vmem [shape: f32[32,1], index: 2, kind: input, shape index: {}]
  %s3 = inlined_call_operand.vmem [shape: f32[4,32], index: 3, kind: input, shape index: {}]
  %s4 = inlined_call_operand.vmem [shape: f32[4,1], index: 4, kind: input, shape index: {}]
  %s5 = inlined_call_operand.hbm [shape: f32[2,4,256], index: 5, kind: output, shape index: {}]
  %s6 = sld [smem:[#allocation0]]
  $region53: #{tpu_custom_call.1} parent=0
    _
  %s8 = ssub.s32 1, %s6
  %s9 = scalar_select 0, %s8, %s6
  $region1: #{tpu_custom_call.1} parent=0
    #allocation2 [shape = 'u8[8192]{0}', space=vmem, size = 0x2000, scoped, tag = 'output window, operand 0']
    #allocation3 [shape = 's32[2]{0}', space=sflag, size = 0x8, scoped, tag = 'scoped memory for tpu_custom_call.1']
    %10 = vsyncpa [#allocation3], 0
    %s11 = scalar_lea.sflag [#allocation3], 1
    %12 = vsyncpa %s11, 0
    loop: start=0, step=1, limit=4
    $region2: #{tpu_custom_call.1} parent=1 // loop_pre_header
      _
    $region3: #{tpu_custom_call.1} parent=1 // loop_header
      %s14 = sphi 0, %s18
      %p15 = scmp.ge.s32.totalorder %s14, 4
      %s21 = sphi 0, %s33
      %s22 = sphi 0, %s29
      %s23 = sphi 0, %s21
      %s24 = sphi 0, %s22
      %s25 = sphi 0, %s23
      %s26 = sphi 0, %s24
      %s38 = sphi 0, %s40
      %s41 = sphi 0, %s38
      %s42 = sphi 0, %s41
      %s58 = sphi 0, %s42
      %s62 = sphi 0, %s62
      %s64 = sphi 0, %s62
      %s65 = sphi 0, %s64
      %s79 = sphi 0, %s65
      %s83 = sphi 0, %s83
      %s85 = sphi 0, %s83
      %s86 = sphi 0, %s85
      %s100 = sphi 0, %s86
      %s104 = sphi 0, %s104
      %s106 = sphi 0, %s104
      %s107 = sphi 0, %s106
      %s121 = sphi 0, %s107
      %s125 = sphi 0, %s125
      %s127 = sphi 0, %s125
      %s128 = sphi 0, %s127
      %s142 = sphi 0, %s128
      %s150 = sphi 0, %s152
      %s153 = sphi 0, %s150
      %s154 = sphi 0, %s153
      %s170 = sphi 0, %s154
    $region4: #{tpu_custom_call.1} parent=1 // loop_header_branch
      %17 = sbr.rel (%p15) target = $region8
    $region5: #{tpu_custom_call.1} parent=1 // loop_body
      %s19 = ssub.s32 %s14, 1
      %s20 = ssub.s32 %s14, 2
      %s27 = sadd.s32 1, %s22
      %p28 = scmp.ge.s32.totalorder %s27, 1
      %s29 = scalar_select %p28, 0, %s27
      %s30 = sadd.s32 1, %s21
      %s31 = scalar_select %p28, %s30, %s21
      %p32 = scmp.ge.s32.totalorder %s31, 2
      %s33 = scalar_select %p32, 0, %s31
      %s34 = ssub.s32 %s21, %s33
      %s35 = ssub.s32 %s22, %s29
      %s36 = sor.u32 %s34, %s35
      %p37 = scmp.eq.s32.totalorder %s36, 0
      %s39 = sadd.s32 %s38, 1
      %s40 = scalar_select %p37, %s38, %s39
      %p43 = pneg %p37
      %p44 = scmp.eq.s32.totalorder %s14, 1
      %p45 = por %p43, %p44
      %p46 = scmp.ne.s32.totalorder %s38, %s41
      %p47 = scmp.eq.s32.totalorder %s14, 0
      %p48 = por %p46, %p47
      %p49 = scmp.ne.s32.totalorder %s38, %s41
      %p50 = scmp.eq.s32.totalorder %s19, 1
      %p51 = por %p49, %p50
      %p52 = scmp.ne.s32.totalorder %s41, %s42
      %p53 = scmp.eq.s32.totalorder %s19, 0
      %p54 = por %p52, %p53
      %p55 = scmp.ne.s32.totalorder %s41, %s42
      %p56 = scmp.eq.s32.totalorder %s20, 1
      %p57 = por %p55, %p56
      %p59 = scmp.ne.s32.totalorder %s42, %s58
      %p60 = scmp.eq.s32.totalorder %s20, 0
      %p61 = por %p59, %p60
      %s63 = sadd.s32 %s62, 1
      %p66 = scmp.eq.s32.totalorder %s14, 1
      %p67 = scmp.ne.s32.totalorder %s62, %s64
      %p68 = scmp.eq.s32.totalorder %s14, 0
      %p69 = por %p67, %p68
      %p70 = scmp.ne.s32.totalorder %s62, %s64
      %p71 = scmp.eq.s32.totalorder %s19, 1
      %p72 = por %p70, %p71
      %p73 = scmp.ne.s32.totalorder %s64, %s65
      %p74 = scmp.eq.s32.totalorder %s19, 0
      %p75 = por %p73, %p74
      %p76 = scmp.ne.s32.totalorder %s64, %s65
      %p77 = scmp.eq.s32.totalorder %s20, 1
      %p78 = por %p76, %p77
      %p80 = scmp.ne.s32.totalorder %s65, %s79
      %p81 = scmp.eq.s32.totalorder %s20, 0
      %p82 = por %p80, %p81
      %s84 = sadd.s32 %s83, 1
      %p87 = scmp.eq.s32.totalorder %s14, 1
      %p88 = scmp.ne.s32.totalorder %s83, %s85
      %p89 = scmp.eq.s32.totalorder %s14, 0
      %p90 = por %p88, %p89
      %p91 = scmp.ne.s32.totalorder %s83, %s85
      %p92 = scmp.eq.s32.totalorder %s19, 1
      %p93 = por %p91, %p92
      %p94 = scmp.ne.s32.totalorder %s85, %s86
      %p95 = scmp.eq.s32.totalorder %s19, 0
      %p96 = por %p94, %p95
      %p97 = scmp.ne.s32.totalorder %s85, %s86
      %p98 = scmp.eq.s32.totalorder %s20, 1
      %p99 = por %p97, %p98
      %p101 = scmp.ne.s32.totalorder %s86, %s100
      %p102 = scmp.eq.s32.totalorder %s20, 0
      %p103 = por %p101, %p102
      %s105 = sadd.s32 %s104, 1
      %p108 = scmp.eq.s32.totalorder %s14, 1
      %p109 = scmp.ne.s32.totalorder %s104, %s106
      %p110 = scmp.eq.s32.totalorder %s14, 0
      %p111 = por %p109, %p110
      %p112 = scmp.ne.s32.totalorder %s104, %s106
      %p113 = scmp.eq.s32.totalorder %s19, 1
      %p114 = por %p112, %p113
      %p115 = scmp.ne.s32.totalorder %s106, %s107
      %p116 = scmp.eq.s32.totalorder %s19, 0
      %p117 = por %p115, %p116
      %p118 = scmp.ne.s32.totalorder %s106, %s107
      %p119 = scmp.eq.s32.totalorder %s20, 1
      %p120 = por %p118, %p119
      %p122 = scmp.ne.s32.totalorder %s107, %s121
      %p123 = scmp.eq.s32.totalorder %s20, 0
      %p124 = por %p122, %p123
      %s126 = sadd.s32 %s125, 1
      %p129 = scmp.eq.s32.totalorder %s14, 1
      %p130 = scmp.ne.s32.totalorder %s125, %s127
      %p131 = scmp.eq.s32.totalorder %s14, 0
      %p132 = por %p130, %p131
      %p133 = scmp.ne.s32.totalorder %s125, %s127
      %p134 = scmp.eq.s32.totalorder %s19, 1
      %p135 = por %p133, %p134
      %p136 = scmp.ne.s32.totalorder %s127, %s128
      %p137 = scmp.eq.s32.totalorder %s19, 0
      %p138 = por %p136, %p137
      %p139 = scmp.ne.s32.totalorder %s127, %s128
      %p140 = scmp.eq.s32.totalorder %s20, 1
      %p141 = por %p139, %p140
      %p143 = scmp.ne.s32.totalorder %s128, %s142
      %p144 = scmp.eq.s32.totalorder %s20, 0
      %p145 = por %p143, %p144
      %s146 = ssub.s32 %s21, %s33
      %s147 = ssub.s32 %s22, %s29
      %s148 = sor.u32 %s146, %s147
      %p149 = scmp.eq.s32.totalorder %s148, 0
      %s151 = sadd.s32 %s150, 1
      %s152 = scalar_select %p149, %s150, %s151
      %p155 = pneg %p149
      %p156 = scmp.eq.s32.totalorder %s14, 1
      %p157 = por %p155, %p156
      %p158 = scmp.ne.s32.totalorder %s150, %s153
      %p159 = scmp.eq.s32.totalorder %s14, 0
      %p160 = por %p158, %p159
      %p161 = scmp.ne.s32.totalorder %s150, %s153
      %p162 = scmp.eq.s32.totalorder %s19, 1
      %p163 = por %p161, %p162
      %p164 = scmp.ne.s32.totalorder %s153, %s154
      %p165 = scmp.eq.s32.totalorder %s19, 0
      %p166 = por %p164, %p165
      %p167 = scmp.ne.s32.totalorder %s153, %s154
      %p168 = scmp.eq.s32.totalorder %s20, 1
      %p169 = por %p167, %p168
      %p171 = scmp.ne.s32.totalorder %s154, %s170
      %p172 = scmp.eq.s32.totalorder %s20, 0
      %p173 = por %p171, %p172
      %p174 = scmp.le.s32.totalorder 1, %s14
      %p175 = scmp.lt.s32.totalorder %s14, 3
      %p176 = pnand %p174, %p175
      %p177 = pneg %p176
      // Predicated region
      $region9: #{tpu_custom_call.1} parent=5 // pred_check
        _
      $region10: #{tpu_custom_call.1} parent=5 // pred_check_branch
        %179 = sbr.rel (%p176) target = $region12
      $region11: #{tpu_custom_call.1} parent=5 // pred_region
        %s180 = ssub.s32 %s14, 1
        // Predicated region
        $region13: #{tpu_custom_call.1} parent=11 // pred_check
          %p181 = pneg %p75
        $region14: #{tpu_custom_call.1} parent=11 // pred_check_branch
          %183 = sbr.rel (%p181) target = $region16
        $region15: #{tpu_custom_call.1} parent=11 // pred_region
          _
        $region16: #{tpu_custom_call.1} parent=11 // pred_fallthru
          _
        // Predicated region
        $region17: #{tpu_custom_call.1} parent=11 // pred_check
          %p184 = pneg %p96
        $region18: #{tpu_custom_call.1} parent=11 // pred_check_branch
          %186 = sbr.rel (%p184) target = $region20
        $region19: #{tpu_custom_call.1} parent=11 // pred_region
          _
        $region20: #{tpu_custom_call.1} parent=11 // pred_fallthru
          _
        // Predicated region
        $region21: #{tpu_custom_call.1} parent=11 // pred_check
          %p187 = pneg %p117
        $region22: #{tpu_custom_call.1} parent=11 // pred_check_branch
          %189 = sbr.rel (%p187) target = $region24
        $region23: #{tpu_custom_call.1} parent=11 // pred_region
          _
        $region24: #{tpu_custom_call.1} parent=11 // pred_fallthru
          _
        // Predicated region
        $region25: #{tpu_custom_call.1} parent=11 // pred_check
          %p190 = pneg %p138
        $region26: #{tpu_custom_call.1} parent=11 // pred_check_branch
          %192 = sbr.rel (%p190) target = $region28
        $region27: #{tpu_custom_call.1} parent=11 // pred_region
          _
        $region28: #{tpu_custom_call.1} parent=11 // pred_fallthru
          _
      $region12: #{tpu_custom_call.1} parent=5 // pred_fallthru
        _
      %p193 = scmp.lt.s32.totalorder %s14, 2
      // Predicated region
      $region29: #{tpu_custom_call.1} parent=5 // pred_check
        %p194 = pneg %p193
      $region30: #{tpu_custom_call.1} parent=5 // pred_check_branch
        %196 = sbr.rel (%p194) target = $region32
      $region31: #{tpu_custom_call.1} parent=5 // pred_region
        // Predicated region
        $region33: #{tpu_custom_call.1} parent=31 // pred_check
          %p197 = pneg %p48
        $region34: #{tpu_custom_call.1} parent=31 // pred_check_branch
          %199 = sbr.rel (%p197) target = $region36
        $region35: #{tpu_custom_call.1} parent=31 // pred_region
          %s200 = smul.u32 2, %s22
          %p201 = scmp.lt.s32.totalorder %s21, 1
          %s202 = scalar_select %p201, %s21, 1
          %p203 = scmp.lt.s32.totalorder %s200, 1
          %s204 = scalar_select %p203, %s200, 1
          %s205 = smul.addr %s202, 2
          %s206 = sadd.s32 %s204, %s205
          %s207 = smul.addr %s206, 4
          %s208 = scalar_lea.vmem %s0, %s207
          %s209 = smul.u32 2, %s22
        $region36: #{tpu_custom_call.1} parent=31 // pred_fallthru
          _
      $region32: #{tpu_custom_call.1} parent=5 // pred_fallthru
        _
      %p210 = scmp.le.s32.totalorder 1, %s14
      %p211 = scmp.lt.s32.totalorder %s14, 3
      %p212 = pnand %p210, %p211
      %p213 = pneg %p212
      // Predicated region
      $region37: #{tpu_custom_call.1} parent=5 // pred_check
        _
      $region38: #{tpu_custom_call.1} parent=5 // pred_check_branch
        %215 = sbr.rel (%p212) target = $region40
      $region39: #{tpu_custom_call.1} parent=5 // pred_region
        %s216 = ssub.s32 %s14, 1
        %s217 = smul.u32 2, %s24
        %p218 = scmp.lt.s32.totalorder %s23, 1
        %s219 = scalar_select %p218, %s23, 1
        %p220 = scmp.lt.s32.totalorder %s217, 1
        %s221 = scalar_select %p220, %s217, 1
        %s222 = smul.addr %s219, 2
        %s223 = sadd.s32 %s221, %s222
        %s224 = smul.addr %s223, 4
        %s225 = scalar_lea.vmem %s0, %s224
        %p226 = pneg %p54
        %p227 = pneg %p51
        %p228 = pneg %p75
        %p229 = pneg %p72
        %p230 = pneg %p96
        %p231 = pneg %p93
        %p232 = pneg %p117
        %p233 = pneg %p114
        %p234 = pneg %p138
        %p235 = pneg %p135
        %p236 = pneg %p166
        %p237 = pneg %p163
        %s238 = sand.u32 %s153, 1
        %s239 = scalar_lea.sflag [#allocation3], %s238
        %s240 = sand.u32 %s153, 1
        %s241 = smul.addr %s240, 8
        %s242 = scalar_lea.vmem [#allocation2], %s241
        %s243 = smul.u32 2, %s24
        %p244 = scmp.lt.s32.totalorder %s23, 1
        %s245 = scalar_select %p244, %s23, 1
        %p246 = scmp.lt.s32.totalorder %s243, 1
        %s247 = scalar_select %p246, %s243, 1
        %s248 = smul.addr %s245, 2
        %s249 = sadd.s32 %s247, %s248
        %s250 = smul.addr %s249, 4
        %s251 = scalar_lea.vmem %s0, %s250
        %s252 = smul.u32 2, %s24
        %s253 = smul.u32 2, %s24
        %v254 = vld [vmem:[%s251] sm:$0xff]
        %v255 = vld [vmem:[%s1] sm:$0xff]
        %v256 = vld [vmem:[%s1 + $0x8] sm:$0xff]
        %v257 = vld [vmem:[%s1 + $0x10] sm:$0xff]
        %v258 = vld [vmem:[%s1 + $0x18] sm:$0xff]
        %v259 = vld [vmem:[%s2] sm:$0xff]
        %v260 = vld [vmem:[%s2 + $0x8] sm:$0xff]
        %v261 = vld [vmem:[%s2 + $0x10] sm:$0xff]
        %v262 = vld [vmem:[%s2 + $0x18] sm:$0xff]
        %264 = vset.pattern.permute.xlu0 0
        %265 = vperm.xlu0 %264, %v259
        %v266 = vpop.permute.xlu0 %265
        %269 = vset.pattern.permute.xlu0 0
        %270 = vperm.xlu0 %269, %v260
        %v271 = vpop.permute.xlu0 %270
        %274 = vset.pattern.permute.xlu0 0
        %275 = vperm.xlu0 %274, %v261
        %v276 = vpop.permute.xlu0 %275
        %279 = vset.pattern.permute.xlu0 0
        %280 = vperm.xlu0 %279, %v262
        %v281 = vpop.permute.xlu0 %280
        %v284 = vcombine.high %v254, %v254
        %vm285 = vcmask 31744
        %v287 = vsel %vm285, %v255, 0
        %v290 = vsel %vm285, %v256, 0
        %v293 = vsel %vm285, %v257, 0
        %v296 = vsel %vm285, %v258, 0
        %vm298 = vcmask 1043456
        %v299 = vsel %vm298, %v254, 0
        %v301 = vsel %vm298, %v284, 0
        %303 = vmatprep.subr.mxu0 %v301
        %304 = vmatpush1.msra.mxu0 %v299
        %305 = vmatprep.subr.mxu0 0.0
        %306 = vmatpush1.msra.mxu0 0.0
        %307 = vmatprep.subr.mxu0 0.0
        %308 = vmatpush1.msra.mxu0 0.0
        %309 = vmatprep.subr.mxu0 0.0
        %310 = vmatpush1.msra.mxu0 0.0
        %311 = vmatprep.subr.mxu0 0.0
        %312 = vmatpush1.msra.mxu0 0.0
        %313 = vmatprep.subr.mxu0 0.0
        %314 = vmatpush1.msra.mxu0 0.0
        %315 = vmatprep.subr.mxu0 0.0
        %316 = vmatpush1.msra.mxu0 0.0
        %317 = vmatprep.subr.mxu0 0.0
        %318 = vmatpush1.msra.mxu0 0.0
        %319 = vmatprep.subr.mxu0 0.0
        %320 = vmatpush1.msra.mxu0 0.0
        %321 = vmatprep.subr.mxu0 0.0
        %322 = vmatpush1.msra.mxu0 0.0
        %323 = vmatprep.subr.mxu0 0.0
        %324 = vmatpush1.msra.mxu0 0.0
        %325 = vmatprep.subr.mxu0 0.0
        %326 = vmatpush1.msra.mxu0 0.0
        %327 = vmatprep.subr.mxu0 0.0
        %328 = vmatpush1.msra.mxu0 0.0
        %329 = vmatprep.subr.mxu0 0.0
        %330 = vmatpush1.msra.mxu0 0.0
        %331 = vmatprep.subr.mxu0 0.0
        %332 = vmatpush1.msra.mxu0 0.0
        %333 = vmatprep.subr.mxu0 0.0
        %334 = vmatpush1.msra.mxu0 0.0
        %335 = vmatprep.subr.mxu0 0.0
        %336 = vmatpush1.msra.mxu0 0.0
        %337 = vmatprep.subr.mxu0 0.0
        %338 = vmatpush1.msra.mxu0 0.0
        %339 = vmatprep.subr.mxu0 0.0
        %340 = vmatpush1.msra.mxu0 0.0
        %341 = vmatprep.subr.mxu0 0.0
        %342 = vmatpush1.msra.mxu0 0.0
        %343 = vmatprep.subr.mxu0 0.0
        %344 = vmatpush1.msra.mxu0 0.0
        %345 = vmatprep.subr.mxu0 0.0
        %346 = vmatpush1.msra.mxu0 0.0
        %347 = vmatprep.subr.mxu0 0.0
        %348 = vmatpush1.msra.mxu0 0.0
        %349 = vmatprep.subr.mxu0 0.0
        %350 = vmatpush1.msra.mxu0 0.0
        %351 = vmatprep.subr.mxu0 0.0
        %352 = vmatpush1.msra.mxu0 0.0
        %353 = vmatprep.subr.mxu0 0.0
        %354 = vmatpush1.msra.mxu0 0.0
        %355 = vmatprep.subr.mxu0 0.0
        %356 = vmatpush1.msra.mxu0 0.0
        %357 = vmatprep.subr.mxu0 0.0
        %358 = vmatpush1.msra.mxu0 0.0
        %359 = vmatprep.subr.mxu0 0.0
        %360 = vmatpush1.msra.mxu0 0.0
        %361 = vmatprep.subr.mxu0 0.0
        %362 = vmatpush1.msra.mxu0 0.0
        %363 = vmatprep.subr.mxu0 0.0
        %364 = vmatpush1.msra.mxu0 0.0
        %365 = vmatprep.subr.mxu0 0.0
        %366 = vmatpush1.msra.mxu0 0.0
        %367 = vmatprep.mubr.f32.mxu0 0.0
        %368 = vmatmul.mubr.f32.gmra.mrb[0].mxu0 %v287
        %v369 = vpop.f32.mrb[0].mxu0
        %v370 = vadd.f32 %v266, %v369
        %v371 = vpop.f32.mrb[0].mxu0
        %v372 = vadd.f32 %v266, %v371
        %373 = vmatprep.mubr.f32.mxu0 0.0
        %374 = vmatmul.mubr.f32.gmra.mrb[0].mxu0 %v290
        %v375 = vpop.f32.mrb[0].mxu0
        %v376 = vadd.f32 %v271, %v375
        %v377 = vpop.f32.mrb[0].mxu0
        %v378 = vadd.f32 %v271, %v377
        %379 = vmatprep.mubr.f32.mxu0 0.0
        %380 = vmatmul.mubr.f32.gmra.mrb[0].mxu0 %v293
        %v381 = vpop.f32.mrb[0].mxu0
        %v382 = vadd.f32 %v276, %v381
        %v383 = vpop.f32.mrb[0].mxu0
        %v384 = vadd.f32 %v276, %v383
        %385 = vmatprep.mubr.f32.mxu0 0.0
        %386 = vmatmul.mubr.f32.gmra.mrb[0].mxu0 %v296
        %v387 = vpop.f32.mrb[0].mxu0
        %v388 = vadd.f32 %v281, %v387
        %v389 = vpop.f32.mrb[0].mxu0
        %v390 = vadd.f32 %v281, %v389
        %391 = vdwg.mxu0
        %v392 = vmul.f32 %v370, %v370
        %v393 = vmul.f32 %v372, %v372
        %v394 = vmul.f32 %v376, %v376
        %v395 = vmul.f32 %v378, %v378
        %v396 = vmul.f32 %v382, %v382
        %v397 = vmul.f32 %v384, %v384
        %v398 = vmul.f32 %v388, %v388
        %v399 = vmul.f32 %v390, %v390
        %v400 = vmul.f32 %v370, %v392
        %v401 = vmul.f32 %v372, %v393
        %v402 = vmul.f32 %v376, %v394
        %v403 = vmul.f32 %v378, %v395
        %v404 = vmul.f32 %v382, %v396
        %v405 = vmul.f32 %v384, %v397
        %v406 = vmul.f32 %v388, %v398
        %v407 = vmul.f32 %v390, %v399
        %v408 = vmul.f32 %v400, 0.044715
        %v409 = vmul.f32 %v401, 0.044715
        %v410 = vmul.f32 %v402, 0.044715
        %v411 = vmul.f32 %v403, 0.044715
        %v412 = vmul.f32 %v404, 0.044715
        %v413 = vmul.f32 %v405, 0.044715
        %v414 = vmul.f32 %v406, 0.044715
        %v415 = vmul.f32 %v407, 0.044715
        %v416 = vadd.f32 %v370, %v408
        %v417 = vadd.f32 %v372, %v409
        %v418 = vadd.f32 %v376, %v410
        %v419 = vadd.f32 %v378, %v411
        %v420 = vadd.f32 %v382, %v412
        %v421 = vadd.f32 %v384, %v413
        %v422 = vadd.f32 %v388, %v414
        %v423 = vadd.f32 %v390, %v415
        %v424 = vmul.f32 %v416, 0.7978846
        %v425 = vmul.f32 %v417, 0.7978846
        %v426 = vmul.f32 %v418, 0.7978846
        %v427 = vmul.f32 %v419, 0.7978846
        %v428 = vmul.f32 %v420, 0.7978846
        %v429 = vmul.f32 %v421, 0.7978846
        %v430 = vmul.f32 %v422, 0.7978846
        %v431 = vmul.f32 %v423, 0.7978846
        %v432 = vtanh.pop %v424
        %v433 = vtanh.pop %v425
        %v434 = vtanh.pop %v426
        %v435 = vtanh.pop %v427
        %v436 = vtanh.pop %v428
        %v437 = vtanh.pop %v429
        %v438 = vtanh.pop %v430
        %v439 = vtanh.pop %v431
        %v440 = vadd.f32 %v432, 1.0
        %v441 = vadd.f32 %v433, 1.0
        %v442 = vadd.f32 %v434, 1.0
        %v443 = vadd.f32 %v435, 1.0
        %v444 = vadd.f32 %v436, 1.0
        %v445 = vadd.f32 %v437, 1.0
        %v446 = vadd.f32 %v438, 1.0
        %v447 = vadd.f32 %v439, 1.0
        %v448 = vmul.f32 %v440, 0.5
        %v449 = vmul.f32 %v441, 0.5
        %v450 = vmul.f32 %v442, 0.5
        %v451 = vmul.f32 %v443, 0.5
        %v452 = vmul.f32 %v444, 0.5
        %v453 = vmul.f32 %v445, 0.5
        %v454 = vmul.f32 %v446, 0.5
        %v455 = vmul.f32 %v447, 0.5
        %v456 = vmul.f32 %v370, %v448
        %v457 = vmul.f32 %v372, %v449
        %v458 = vmul.f32 %v376, %v450
        %v459 = vmul.f32 %v378, %v451
        %v460 = vmul.f32 %v382, %v452
        %v461 = vmul.f32 %v384, %v453
        %v462 = vmul.f32 %v388, %v454
        %v463 = vmul.f32 %v390, %v455
        %v464 = vld [vmem:[%s3] sm:$0xf]
        %v465 = vld [vmem:[%s4] sm:$0xf]
        %467 = vset.pattern.permute.xlu0 0
        %468 = vperm.xlu0 %467, %v465
        %v469 = vpop.permute.xlu0 %468
        %vm471 = vcmask 261120
        %v473 = vsel %vm471, %v464, 0
        %475 = vmatprep.subr.mxu0 %v457
        %476 = vmatpush1.msra.mxu0 %v456
        %477 = vmatprep.subr.mxu0 %v459
        %478 = vmatpush1.msra.mxu0 %v458
        %479 = vmatprep.subr.mxu0 %v461
        %480 = vmatpush1.msra.mxu0 %v460
        %481 = vmatprep.subr.mxu0 %v463
        %482 = vmatpush1.msra.mxu0 %v462
        %483 = vmatprep.subr.mxu0 0.0
        %484 = vmatpush1.msra.mxu0 0.0
        %485 = vmatprep.subr.mxu0 0.0
        %486 = vmatpush1.msra.mxu0 0.0
        %487 = vmatprep.subr.mxu0 0.0
        %488 = vmatpush1.msra.mxu0 0.0
        %489 = vmatprep.subr.mxu0 0.0
        %490 = vmatpush1.msra.mxu0 0.0
        %491 = vmatprep.subr.mxu0 0.0
        %492 = vmatpush1.msra.mxu0 0.0
        %493 = vmatprep.subr.mxu0 0.0
        %494 = vmatpush1.msra.mxu0 0.0
        %495 = vmatprep.subr.mxu0 0.0
        %496 = vmatpush1.msra.mxu0 0.0
        %497 = vmatprep.subr.mxu0 0.0
        %498 = vmatpush1.msra.mxu0 0.0
        %499 = vmatprep.subr.mxu0 0.0
        %500 = vmatpush1.msra.mxu0 0.0
        %501 = vmatprep.subr.mxu0 0.0
        %502 = vmatpush1.msra.mxu0 0.0
        %503 = vmatprep.subr.mxu0 0.0
        %504 = vmatpush1.msra.mxu0 0.0
        %505 = vmatprep.subr.mxu0 0.0
        %506 = vmatpush1.msra.mxu0 0.0
        %507 = vmatprep.subr.mxu0 0.0
        %508 = vmatpush1.msra.mxu0 0.0
        %509 = vmatprep.subr.mxu0 0.0
        %510 = vmatpush1.msra.mxu0 0.0
        %511 = vmatprep.subr.mxu0 0.0
        %512 = vmatpush1.msra.mxu0 0.0
        %513 = vmatprep.subr.mxu0 0.0
        %514 = vmatpush1.msra.mxu0 0.0
        %515 = vmatprep.subr.mxu0 0.0
        %516 = vmatpush1.msra.mxu0 0.0
        %517 = vmatprep.subr.mxu0 0.0
        %518 = vmatpush1.msra.mxu0 0.0
        %519 = vmatprep.subr.mxu0 0.0
        %520 = vmatpush1.msra.mxu0 0.0
        %521 = vmatprep.subr.mxu0 0.0
        %522 = vmatpush1.msra.mxu0 0.0
        %523 = vmatprep.subr.mxu0 0.0
        %524 = vmatpush1.msra.mxu0 0.0
        %525 = vmatprep.subr.mxu0 0.0
        %526 = vmatpush1.msra.mxu0 0.0
        %527 = vmatprep.subr.mxu0 0.0
        %528 = vmatpush1.msra.mxu0 0.0
        %529 = vmatprep.subr.mxu0 0.0
        %530 = vmatpush1.msra.mxu0 0.0
        %531 = vmatprep.subr.mxu0 0.0
        %532 = vmatpush1.msra.mxu0 0.0
        %533 = vmatprep.subr.mxu0 0.0
        %534 = vmatpush1.msra.mxu0 0.0
        %535 = vmatprep.subr.mxu0 0.0
        %536 = vmatpush1.msra.mxu0 0.0
        %537 = vmatprep.subr.mxu0 0.0
        %538 = vmatpush1.msra.mxu0 0.0
        %539 = vmatprep.mubr.f32.mxu0 0.0
        %540 = vmatmul.mubr.f32.gmra.mrb[0].mxu0 %v473
        %v541 = vpop.f32.mrb[0].mxu0
        %v542 = vadd.f32 %v469, %v541
        %v543 = vpop.f32.mrb[0].mxu0
        %v544 = vadd.f32 %v469, %v543
        %545 = vdwg.mxu0
        %v547 = vadd.f32 %v542, %v254
        %v548 = vadd.f32 %v544, %v284
        %v551 = vcombine.low %v547, %v548
        %553 = vst [vmem:[%s242] sm:$0xff] %v551
        %s554 = sand.u32 %s153, 1
        %s555 = scalar_lea.sflag [#allocation3], %s554
        %s556 = sand.u32 %s153, 1
        %s557 = smul.addr %s556, 8
        %s558 = scalar_lea.vmem [#allocation2], %s557
        // Predicated region
        $region41: #{tpu_custom_call.1} parent=39 // pred_check
          %p559 = pneg %p163
        $region42: #{tpu_custom_call.1} parent=39 // pred_check_branch
          %561 = sbr.rel (%p559) target = $region44
        $region43: #{tpu_custom_call.1} parent=39 // pred_region
          %s562 = smul.u32 2, %s24
          %s564 = ssub.s32 128, 128
          %565 = vsyncadd %s555, %s564
          %s566 = smul.addr %s23, 2
          %s567 = sadd.s32 %s562, %s566
          %s568 = smul.addr %s567, 64
          %s569 = scalar_lea.hbm %s5, %s568
          %s571 = sshll.u32 %s558, 4
          %s572 = int_to_ptr.vmem [resolvable:$true] %s571
          %574 = dma.vmem_to_hbm [thread:$0]  %s572, 128, %s569, %s555
        $region44: #{tpu_custom_call.1} parent=39 // pred_fallthru
          _
      $region40: #{tpu_custom_call.1} parent=5 // pred_fallthru
        _
      %p575 = scmp.le.s32.totalorder 2, %s14
      // Predicated region
      $region45: #{tpu_custom_call.1} parent=5 // pred_check
        %p576 = pneg %p575
      $region46: #{tpu_custom_call.1} parent=5 // pred_check_branch
        %578 = sbr.rel (%p576) target = $region48
      $region47: #{tpu_custom_call.1} parent=5 // pred_region
        %s579 = ssub.s32 %s14, 2
        // Predicated region
        $region49: #{tpu_custom_call.1} parent=47 // pred_check
          %p580 = pneg %p169
        $region50: #{tpu_custom_call.1} parent=47 // pred_check_branch
          %582 = sbr.rel (%p580) target = $region52
        $region51: #{tpu_custom_call.1} parent=47 // pred_region
          %s583 = sand.u32 %s154, 1
          %s584 = scalar_lea.sflag [#allocation3], %s583
          %s585 = sand.u32 %s154, 1
          %s586 = smul.addr %s585, 8
          %s587 = scalar_lea.vmem [#allocation2], %s586
          %588 = dma.done %s584, 128
        $region52: #{tpu_custom_call.1} parent=47 // pred_fallthru
          _
      $region48: #{tpu_custom_call.1} parent=5 // pred_fallthru
        _
    $region6: #{tpu_custom_call.1} parent=1 // loop_footer
      %s18 = sadd.s32 1, %s14
    $region7: #{tpu_custom_call.1} parent=1 // loop_footer_branch
      %13 = sbr.rel target = $region3
    $region8: #{tpu_custom_call.1} parent=1 // loop_exit
      _
    %589 = vsyncpa [#allocation3], 1
    %s590 = scalar_lea.sflag [#allocation3], 1
    %591 = vsyncpa %s590, 1

// kernel: tpu_custom_call.1
$region0: #{tpu_custom_call.1}
  #allocation0 [shape = 'u32[]', space=smem, size = 0x4, offset = 0x4, fixed_abs, tag = 'smem constant byte address 0x4 - core index']
  #allocation1 [shape = 'u32[144,128]{1,0:T(1,128)}', space=vmem, size = 0x12000, scoped, tag = 'internal scratch']
  %s0 = inlined_call_operand.vmem [shape: f32[2,4,256], index: 0, kind: input, shape index: {}]
  %s1 = inlined_call_operand.vmem [shape: f32[32,4], index: 1, kind: input, shape index: {}]
  %s2 = inlined_call_operand.vmem [shape: f32[32,1], index: 2, kind: input, shape index: {}]
  %s3 = inlined_call_operand.vmem [shape: f32[4,32], index: 3, kind: input, shape index: {}]
  %s4 = inlined_call_operand.vmem [shape: f32[4,1], index: 4, kind: input, shape index: {}]
  %s5 = inlined_call_operand.hbm [shape: f32[2,4,256], index: 5, kind: output, shape index: {}]
  %s6 = sld [smem:[#allocation0]]
  $region53: #{tpu_custom_call.1} parent=0
    _
  %s8 = ssub.s32 1, %s6
  %s9 = scalar_select 0, %s8, %s6
  $region1: #{tpu_custom_call.1} parent=0
    #allocation2 [shape = 'u8[8192]{0}', space=vmem, size = 0x2000, scoped, tag = 'output window, operand 0']
    #allocation3 [shape = 's32[2]{0}', space=sflag, size = 0x8, scoped, tag = 'scoped memory for tpu_custom_call.1']
    %10 = vsyncpa [#allocation3], 0
    %s11 = scalar_lea.sflag [#allocation3], 1
    %12 = vsyncpa %s11, 0
    loop: start=0, step=1, limit=4
    $region2: #{tpu_custom_call.1} parent=1 // loop_pre_header
      _
    $region3: #{tpu_custom_call.1} parent=1 // loop_header
      %s14 = sphi 0, %s18
      %p15 = scmp.ge.s32.totalorder %s14, 4
      %s21 = sphi 0, %s33
      %s22 = sphi 0, %s29
      %s23 = sphi 0, %s21
      %s24 = sphi 0, %s22
      %s25 = sphi 0, %s23
      %s26 = sphi 0, %s24
      %s38 = sphi 0, %s40
      %s41 = sphi 0, %s38
      %s42 = sphi 0, %s41
      %s58 = sphi 0, %s42
      %s62 = sphi 0, %s62
      %s64 = sphi 0, %s62
      %s65 = sphi 0, %s64
      %s79 = sphi 0, %s65
      %s83 = sphi 0, %s83
      %s85 = sphi 0, %s83
      %s86 = sphi 0, %s85
      %s100 = sphi 0, %s86
      %s104 = sphi 0, %s104
      %s106 = sphi 0, %s104
      %s107 = sphi 0, %s106
      %s121 = sphi 0, %s107
      %s125 = sphi 0, %s125
      %s127 = sphi 0, %s125
      %s128 = sphi 0, %s127
      %s142 = sphi 0, %s128
      %s150 = sphi 0, %s152
      %s153 = sphi 0, %s150
      %s154 = sphi 0, %s153
      %s170 = sphi 0, %s154
    $region4: #{tpu_custom_call.1} parent=1 // loop_header_branch
      %17 = sbr.rel (%p15) target = $region8
    $region5: #{tpu_custom_call.1} parent=1 // loop_body
      %s19 = ssub.s32 %s14, 1
      %s20 = ssub.s32 %s14, 2
      %s27 = sadd.s32 1, %s22
      %p28 = scmp.ge.s32.totalorder %s27, 1
      %s29 = scalar_select %p28, 0, %s27
      %s30 = sadd.s32 1, %s21
      %s31 = scalar_select %p28, %s30, %s21
      %p32 = scmp.ge.s32.totalorder %s31, 2
      %s33 = scalar_select %p32, 0, %s31
      %s34 = ssub.s32 %s21, %s33
      %s35 = ssub.s32 %s22, %s29
      %s36 = sor.u32 %s34, %s35
      %p37 = scmp.eq.s32.totalorder %s36, 0
      %s39 = sadd.s32 %s38, 1
      %s40 = scalar_select %p37, %s38, %s39
      %p43 = pneg %p37
      %p44 = scmp.eq.s32.totalorder %s14, 1
      %p45 = por %p43, %p44
      %p46 = scmp.ne.s32.totalorder %s38, %s41
      %p47 = scmp.eq.s32.totalorder %s14, 0
      %p48 = por %p46, %p47
      %p49 = scmp.ne.s32.totalorder %s38, %s41
      %p50 = scmp.eq.s32.totalorder %s19, 1
      %p51 = por %p49, %p50
      %p52 = scmp.ne.s32.totalorder %s41, %s42
      %p53 = scmp.eq.s32.totalorder %s19, 0
      %p54 = por %p52, %p53
      %p55 = scmp.ne.s32.totalorder %s41, %s42
      %p56 = scmp.eq.s32.totalorder %s20, 1
      %p57 = por %p55, %p56
      %p59 = scmp.ne.s32.totalorder %s42, %s58
      %p60 = scmp.eq.s32.totalorder %s20, 0
      %p61 = por %p59, %p60
      %s63 = sadd.s32 %s62, 1
      %p66 = scmp.eq.s32.totalorder %s14, 1
      %p67 = scmp.ne.s32.totalorder %s62, %s64
      %p68 = scmp.eq.s32.totalorder %s14, 0
      %p69 = por %p67, %p68
      %p70 = scmp.ne.s32.totalorder %s62, %s64
      %p71 = scmp.eq.s32.totalorder %s19, 1
      %p72 = por %p70, %p71
      %p73 = scmp.ne.s32.totalorder %s64, %s65
      %p74 = scmp.eq.s32.totalorder %s19, 0
      %p75 = por %p73, %p74
      %p76 = scmp.ne.s32.totalorder %s64, %s65
      %p77 = scmp.eq.s32.totalorder %s20, 1
      %p78 = por %p76, %p77
      %p80 = scmp.ne.s32.totalorder %s65, %s79
      %p81 = scmp.eq.s32.totalorder %s20, 0
      %p82 = por %p80, %p81
      %s84 = sadd.s32 %s83, 1
      %p87 = scmp.eq.s32.totalorder %s14, 1
      %p88 = scmp.ne.s32.totalorder %s83, %s85
      %p89 = scmp.eq.s32.totalorder %s14, 0
      %p90 = por %p88, %p89
      %p91 = scmp.ne.s32.totalorder %s83, %s85
      %p92 = scmp.eq.s32.totalorder %s19, 1
      %p93 = por %p91, %p92
      %p94 = scmp.ne.s32.totalorder %s85, %s86
      %p95 = scmp.eq.s32.totalorder %s19, 0
      %p96 = por %p94, %p95
      %p97 = scmp.ne.s32.totalorder %s85, %s86
      %p98 = scmp.eq.s32.totalorder %s20, 1
      %p99 = por %p97, %p98
      %p101 = scmp.ne.s32.totalorder %s86, %s100
      %p102 = scmp.eq.s32.totalorder %s20, 0
      %p103 = por %p101, %p102
      %s105 = sadd.s32 %s104, 1
      %p108 = scmp.eq.s32.totalorder %s14, 1
      %p109 = scmp.ne.s32.totalorder %s104, %s106
      %p110 = scmp.eq.s32.totalorder %s14, 0
      %p111 = por %p109, %p110
      %p112 = scmp.ne.s32.totalorder %s104, %s106
      %p113 = scmp.eq.s32.totalorder %s19, 1
      %p114 = por %p112, %p113
      %p115 = scmp.ne.s32.totalorder %s106, %s107
      %p116 = scmp.eq.s32.totalorder %s19, 0
      %p117 = por %p115, %p116
      %p118 = scmp.ne.s32.totalorder %s106, %s107
      %p119 = scmp.eq.s32.totalorder %s20, 1
      %p120 = por %p118, %p119
      %p122 = scmp.ne.s32.totalorder %s107, %s121
      %p123 = scmp.eq.s32.totalorder %s20, 0
      %p124 = por %p122, %p123
      %s126 = sadd.s32 %s125, 1
      %p129 = scmp.eq.s32.totalorder %s14, 1
      %p130 = scmp.ne.s32.totalorder %s125, %s127
      %p131 = scmp.eq.s32.totalorder %s14, 0
      %p132 = por %p130, %p131
      %p133 = scmp.ne.s32.totalorder %s125, %s127
      %p134 = scmp.eq.s32.totalorder %s19, 1
      %p135 = por %p133, %p134
      %p136 = scmp.ne.s32.totalorder %s127, %s128
      %p137 = scmp.eq.s32.totalorder %s19, 0
      %p138 = por %p136, %p137
      %p139 = scmp.ne.s32.totalorder %s127, %s128
      %p140 = scmp.eq.s32.totalorder %s20, 1
      %p141 = por %p139, %p140
      %p143 = scmp.ne.s32.totalorder %s128, %s142
      %p144 = scmp.eq.s32.totalorder %s20, 0
      %p145 = por %p143, %p144
      %s146 = ssub.s32 %s21, %s33
      %s147 = ssub.s32 %s22, %s29
      %s148 = sor.u32 %s146, %s147
      %p149 = scmp.eq.s32.totalorder %s148, 0
      %s151 = sadd.s32 %s150, 1
      %s152 = scalar_select %p149, %s150, %s151
      %p155 = pneg %p149
      %p156 = scmp.eq.s32.totalorder %s14, 1
      %p157 = por %p155, %p156
      %p158 = scmp.ne.s32.totalorder %s150, %s153
      %p159 = scmp.eq.s32.totalorder %s14, 0
      %p160 = por %p158, %p159
      %p161 = scmp.ne.s32.totalorder %s150, %s153
      %p162 = scmp.eq.s32.totalorder %s19, 1
      %p163 = por %p161, %p162
      %p164 = scmp.ne.s32.totalorder %s153, %s154
      %p165 = scmp.eq.s32.totalorder %s19, 0
      %p166 = por %p164, %p165
      %p167 = scmp.ne.s32.totalorder %s153, %s154
      %p168 = scmp.eq.s32.totalorder %s20, 1
      %p169 = por %p167, %p168
      %p171 = scmp.ne.s32.totalorder %s154, %s170
      %p172 = scmp.eq.s32.totalorder %s20, 0
      %p173 = por %p171, %p172
      %p174 = scmp.le.s32.totalorder 1, %s14
      %p175 = scmp.lt.s32.totalorder %s14, 3
      %p176 = pnand %p174, %p175
      %p177 = pneg %p176
      // Predicated region
      $region9: #{tpu_custom_call.1} parent=5 // pred_check
        _
      $region10: #{tpu_custom_call.1} parent=5 // pred_check_branch
        %179 = sbr.rel (%p176) target = $region12
      $region11: #{tpu_custom_call.1} parent=5 // pred_region
        %s180 = ssub.s32 %s14, 1
        // Predicated region
        $region13: #{tpu_custom_call.1} parent=11 // pred_check
          %p181 = pneg %p75
        $region14: #{tpu_custom_call.1} parent=11 // pred_check_branch
          %183 = sbr.rel (%p181) target = $region16
        $region15: #{tpu_custom_call.1} parent=11 // pred_region
          _
        $region16: #{tpu_custom_call.1} parent=11 // pred_fallthru
          _
        // Predicated region
        $region17: #{tpu_custom_call.1} parent=11 // pred_check
          %p184 = pneg %p96
        $region18: #{tpu_custom_call.1} parent=11 // pred_check_branch
          %186 = sbr.rel (%p184) target = $region20
        $region19: #{tpu_custom_call.1} parent=11 // pred_region
          _
        $region20: #{tpu_custom_call.1} parent=11 // pred_fallthru
          _
        // Predicated region
        $region21: #{tpu_custom_call.1} parent=11 // pred_check
          %p187 = pneg %p117
        $region22: #{tpu_custom_call.1} parent=11 // pred_check_branch
          %189 = sbr.rel (%p187) target = $region24
        $region23: #{tpu_custom_call.1} parent=11 // pred_region
          _
        $region24: #{tpu_custom_call.1} parent=11 // pred_fallthru
          _
        // Predicated region
        $region25: #{tpu_custom_call.1} parent=11 // pred_check
          %p190 = pneg %p138
        $region26: #{tpu_custom_call.1} parent=11 // pred_check_branch
          %192 = sbr.rel (%p190) target = $region28
        $region27: #{tpu_custom_call.1} parent=11 // pred_region
          _
        $region28: #{tpu_custom_call.1} parent=11 // pred_fallthru
          _
      $region12: #{tpu_custom_call.1} parent=5 // pred_fallthru
        _
      %p193 = scmp.lt.s32.totalorder %s14, 2
      // Predicated region
      $region29: #{tpu_custom_call.1} parent=5 // pred_check
        %p194 = pneg %p193
      $region30: #{tpu_custom_call.1} parent=5 // pred_check_branch
        %196 = sbr.rel (%p194) target = $region32
      $region31: #{tpu_custom_call.1} parent=5 // pred_region
        // Predicated region
        $region33: #{tpu_custom_call.1} parent=31 // pred_check
          %p197 = pneg %p48
        $region34: #{tpu_custom_call.1} parent=31 // pred_check_branch
          %199 = sbr.rel (%p197) target = $region36
        $region35: #{tpu_custom_call.1} parent=31 // pred_region
          %s200 = smul.u32 2, %s22
          %p201 = scmp.lt.s32.totalorder %s21, 1
          %s202 = scalar_select %p201, %s21, 1
          %p203 = scmp.lt.s32.totalorder %s200, 1
          %s204 = scalar_select %p203, %s200, 1
          %s205 = smul.addr %s202, 2
          %s206 = sadd.s32 %s204, %s205
          %s207 = smul.addr %s206, 4
          %s208 = scalar_lea.vmem %s0, %s207
          %s209 = smul.u32 2, %s22
        $region36: #{tpu_custom_call.1} parent=31 // pred_fallthru
          _
      $region32: #{tpu_custom_call.1} parent=5 // pred_fallthru
        _
      %p210 = scmp.le.s32.totalorder 1, %s14
      %p211 = scmp.lt.s32.totalorder %s14, 3
      %p212 = pnand %p210, %p211
      %p213 = pneg %p212
      // Predicated region
      $region37: #{tpu_custom_call.1} parent=5 // pred_check
        _
      $region38: #{tpu_custom_call.1} parent=5 // pred_check_branch
        %215 = sbr.rel (%p212) target = $region40
      $region39: #{tpu_custom_call.1} parent=5 // pred_region
        %s216 = ssub.s32 %s14, 1
        %s217 = smul.u32 2, %s24
        %p218 = scmp.lt.s32.totalorder %s23, 1
        %s219 = scalar_select %p218, %s23, 1
        %p220 = scmp.lt.s32.totalorder %s217, 1
        %s221 = scalar_select %p220, %s217, 1
        %s222 = smul.addr %s219, 2
        %s223 = sadd.s32 %s221, %s222
        %s224 = smul.addr %s223, 4
        %s225 = scalar_lea.vmem %s0, %s224
        %p226 = pneg %p54
        %p227 = pneg %p51
        %p228 = pneg %p75
        %p229 = pneg %p72
        %p230 = pneg %p96
        %p231 = pneg %p93
        %p232 = pneg %p117
        %p233 = pneg %p114
        %p234 = pneg %p138
        %p235 = pneg %p135
        %p236 = pneg %p166
        %p237 = pneg %p163
        %s238 = sand.u32 %s153, 1
        %s239 = scalar_lea.sflag [#allocation3], %s238
        %s240 = sand.u32 %s153, 1
        %s241 = smul.addr %s240, 8
        %s242 = scalar_lea.vmem [#allocation2], %s241
        %s243 = smul.u32 2, %s24
        %p244 = scmp.lt.s32.totalorder %s23, 1
        %s245 = scalar_select %p244, %s23, 1
        %p246 = scmp.lt.s32.totalorder %s243, 1
        %s247 = scalar_select %p246, %s243, 1
        %s248 = smul.addr %s245, 2
        %s249 = sadd.s32 %s247, %s248
        %s250 = smul.addr %s249, 4
        %s251 = scalar_lea.vmem %s0, %s250
        %s252 = smul.u32 2, %s24
        %s253 = smul.u32 2, %s24
        %v254 = vld [vmem:[%s251] sm:$0xff]
        %v255 = vld [vmem:[%s1] sm:$0xff]
        %v256 = vld [vmem:[%s1 + $0x8] sm:$0xff]
        %v257 = vld [vmem:[%s1 + $0x10] sm:$0xff]
        %v258 = vld [vmem:[%s1 + $0x18] sm:$0xff]
        %v259 = vld [vmem:[%s2] sm:$0xff]
        %v260 = vld [vmem:[%s2 + $0x8] sm:$0xff]
        %v261 = vld [vmem:[%s2 + $0x10] sm:$0xff]
        %v262 = vld [vmem:[%s2 + $0x18] sm:$0xff]
        %264 = vset.pattern.permute.xlu0 0
        %265 = vperm.xlu0 %264, %v259
        %v266 = vpop.permute.xlu0 %265
        %269 = vset.pattern.permute.xlu0 0
        %270 = vperm.xlu0 %269, %v260
        %v271 = vpop.permute.xlu0 %270
        %274 = vset.pattern.permute.xlu0 0
        %275 = vperm.xlu0 %274, %v261
        %v276 = vpop.permute.xlu0 %275
        %279 = vset.pattern.permute.xlu0 0
        %280 = vperm.xlu0 %279, %v262
        %v281 = vpop.permute.xlu0 %280
        %v284 = vcombine.high %v254, %v254
        %vm285 = vcmask 31744
        %v287 = vsel %vm285, %v255, 0
        %v290 = vsel %vm285, %v256, 0
        %v293 = vsel %vm285, %v257, 0
        %v296 = vsel %vm285, %v258, 0
        %vm298 = vcmask 1043456
        %v299 = vsel %vm298, %v254, 0
        %v301 = vsel %vm298, %v284, 0
        %303 = vmatprep.subr.mxu0 %v301
        %304 = vmatpush1.msra.mxu0 %v299
        %305 = vmatprep.subr.mxu0 0.0
        %306 = vmatpush1.msra.mxu0 0.0
        %307 = vmatprep.subr.mxu0 0.0
        %308 = vmatpush1.msra.mxu0 0.0
        %309 = vmatprep.subr.mxu0 0.0
        %310 = vmatpush1.msra.mxu0 0.0
        %311 = vmatprep.subr.mxu0 0.0
        %312 = vmatpush1.msra.mxu0 0.0
        %313 = vmatprep.subr.mxu0 0.0
        %314 = vmatpush1.msra.mxu0 0.0
        %315 = vmatprep.subr.mxu0 0.0
        %316 = vmatpush1.msra.mxu0 0.0
        %317 = vmatprep.subr.mxu0 0.0
        %318 = vmatpush1.msra.mxu0 0.0
        %319 = vmatprep.subr.mxu0 0.0
        %320 = vmatpush1.msra.mxu0 0.0
        %321 = vmatprep.subr.mxu0 0.0
        %322 = vmatpush1.msra.mxu0 0.0
        %323 = vmatprep.subr.mxu0 0.0
        %324 = vmatpush1.msra.mxu0 0.0
        %325 = vmatprep.subr.mxu0 0.0
        %326 = vmatpush1.msra.mxu0 0.0
        %327 = vmatprep.subr.mxu0 0.0
        %328 = vmatpush1.msra.mxu0 0.0
        %329 = vmatprep.subr.mxu0 0.0
        %330 = vmatpush1.msra.mxu0 0.0
        %331 = vmatprep.subr.mxu0 0.0
        %332 = vmatpush1.msra.mxu0 0.0
        %333 = vmatprep.subr.mxu0 0.0
        %334 = vmatpush1.msra.mxu0 0.0
        %335 = vmatprep.subr.mxu0 0.0
        %336 = vmatpush1.msra.mxu0 0.0
        %337 = vmatprep.subr.mxu0 0.0
        %338 = vmatpush1.msra.mxu0 0.0
        %339 = vmatprep.subr.mxu0 0.0
        %340 = vmatpush1.msra.mxu0 0.0
        %341 = vmatprep.subr.mxu0 0.0
        %342 = vmatpush1.msra.mxu0 0.0
        %343 = vmatprep.subr.mxu0 0.0
        %344 = vmatpush1.msra.mxu0 0.0
        %345 = vmatprep.subr.mxu0 0.0
        %346 = vmatpush1.msra.mxu0 0.0
        %347 = vmatprep.subr.mxu0 0.0
        %348 = vmatpush1.msra.mxu0 0.0
        %349 = vmatprep.subr.mxu0 0.0
        %350 = vmatpush1.msra.mxu0 0.0
        %351 = vmatprep.subr.mxu0 0.0
        %352 = vmatpush1.msra.mxu0 0.0
        %353 = vmatprep.subr.mxu0 0.0
        %354 = vmatpush1.msra.mxu0 0.0
        %355 = vmatprep.subr.mxu0 0.0
        %356 = vmatpush1.msra.mxu0 0.0
        %357 = vmatprep.subr.mxu0 0.0
        %358 = vmatpush1.msra.mxu0 0.0
        %359 = vmatprep.subr.mxu0 0.0
        %360 = vmatpush1.msra.mxu0 0.0
        %361 = vmatprep.subr.mxu0 0.0
        %362 = vmatpush1.msra.mxu0 0.0
        %363 = vmatprep.subr.mxu0 0.0
        %364 = vmatpush1.msra.mxu0 0.0
        %365 = vmatprep.subr.mxu0 0.0
        %366 = vmatpush1.msra.mxu0 0.0
        %367 = vmatprep.mubr.f32.mxu0 0.0
        %368 = vmatmul.mubr.f32.gmra.mrb[0].mxu0 %v287
        %v369 = vpop.f32.mrb[0].mxu0
        %v370 = vadd.f32 %v266, %v369
        %v371 = vpop.f32.mrb[0].mxu0
        %v372 = vadd.f32 %v266, %v371
        %373 = vmatprep.mubr.f32.mxu0 0.0
        %374 = vmatmul.mubr.f32.gmra.mrb[0].mxu0 %v290
        %v375 = vpop.f32.mrb[0].mxu0
        %v376 = vadd.f32 %v271, %v375
        %v377 = vpop.f32.mrb[0].mxu0
        %v378 = vadd.f32 %v271, %v377
        %379 = vmatprep.mubr.f32.mxu0 0.0
        %380 = vmatmul.mubr.f32.gmra.mrb[0].mxu0 %v293
        %v381 = vpop.f32.mrb[0].mxu0
        %v382 = vadd.f32 %v276, %v381
        %v383 = vpop.f32.mrb[0].mxu0
        %v384 = vadd.f32 %v276, %v383
        %385 = vmatprep.mubr.f32.mxu0 0.0
        %386 = vmatmul.mubr.f32.gmra.mrb[0].mxu0 %v296
        %v387 = vpop.f32.mrb[0].mxu0
        %v388 = vadd.f32 %v281, %v387
        %v389 = vpop.f32.mrb[0].mxu0
        %v390 = vadd.f32 %v281, %v389
        %391 = vdwg.mxu0
        %v392 = vmul.f32 %v370, %v370
        %v393 = vmul.f32 %v372, %v372
        %v394 = vmul.f32 %v376, %v376
        %v395 = vmul.f32 %v378, %v378
        %v396 = vmul.f32 %v382, %v382
        %v397 = vmul.f32 %v384, %v384
        %v398 = vmul.f32 %v388, %v388
        %v399 = vmul.f32 %v390, %v390
        %v400 = vmul.f32 %v370, %v392
        %v401 = vmul.f32 %v372, %v393
        %v402 = vmul.f32 %v376, %v394
        %v403 = vmul.f32 %v378, %v395
        %v404 = vmul.f32 %v382, %v396
        %v405 = vmul.f32 %v384, %v397
        %v406 = vmul.f32 %v388, %v398
        %v407 = vmul.f32 %v390, %v399
        %v408 = vmul.f32 %v400, 0.044715
        %v409 = vmul.f32 %v401, 0.044715
        %v410 = vmul.f32 %v402, 0.044715
        %v411 = vmul.f32 %v403, 0.044715
        %v412 = vmul.f32 %v404, 0.044715
        %v413 = vmul.f32 %v405, 0.044715
        %v414 = vmul.f32 %v406, 0.044715
        %v415 = vmul.f32 %v407, 0.044715
        %v416 = vadd.f32 %v370, %v408
        %v417 = vadd.f32 %v372, %v409
        %v418 = vadd.f32 %v376, %v410
        %v419 = vadd.f32 %v378, %v411
        %v420 = vadd.f32 %v382, %v412
        %v421 = vadd.f32 %v384, %v413
        %v422 = vadd.f32 %v388, %v414
        %v423 = vadd.f32 %v390, %v415
        %v424 = vmul.f32 %v416, 0.7978846
        %v425 = vmul.f32 %v417, 0.7978846
        %v426 = vmul.f32 %v418, 0.7978846
        %v427 = vmul.f32 %v419, 0.7978846
        %v428 = vmul.f32 %v420, 0.7978846
        %v429 = vmul.f32 %v421, 0.7978846
        %v430 = vmul.f32 %v422, 0.7978846
        %v431 = vmul.f32 %v423, 0.7978846
        %v432 = vtanh.pop %v424
        %v433 = vtanh.pop %v425
        %v434 = vtanh.pop %v426
        %v435 = vtanh.pop %v427
        %v436 = vtanh.pop %v428
        %v437 = vtanh.pop %v429
        %v438 = vtanh.pop %v430
        %v439 = vtanh.pop %v431
        %v440 = vadd.f32 %v432, 1.0
        %v441 = vadd.f32 %v433, 1.0
        %v442 = vadd.f32 %v434, 1.0
        %v443 = vadd.f32 %v435, 1.0
        %v444 = vadd.f32 %v436, 1.0
        %v445 = vadd.f32 %v437, 1.0
        %v446 = vadd.f32 %v438, 1.0
        %v447 = vadd.f32 %v439, 1.0
        %v448 = vmul.f32 %v440, 0.5
        %v449 = vmul.f32 %v441, 0.5
        %v450 = vmul.f32 %v442, 0.5
        %v451 = vmul.f32 %v443, 0.5
        %v452 = vmul.f32 %v444, 0.5
        %v453 = vmul.f32 %v445, 0.5
        %v454 = vmul.f32 %v446, 0.5
        %v455 = vmul.f32 %v447, 0.5
        %v456 = vmul.f32 %v370, %v448
        %v457 = vmul.f32 %v372, %v449
        %v458 = vmul.f32 %v376, %v450
        %v459 = vmul.f32 %v378, %v451
        %v460 = vmul.f32 %v382, %v452
        %v461 = vmul.f32 %v384, %v453
        %v462 = vmul.f32 %v388, %v454
        %v463 = vmul.f32 %v390, %v455
        %v464 = vld [vmem:[%s3] sm:$0xf]
        %v465 = vld [vmem:[%s4] sm:$0xf]
        %467 = vset.pattern.permute.xlu0 0
        %468 = vperm.xlu0 %467, %v465
        %v469 = vpop.permute.xlu0 %468
        %vm471 = vcmask 261120
        %v473 = vsel %vm471, %v464, 0
        %475 = vmatprep.subr.mxu0 %v457
        %476 = vmatpush1.msra.mxu0 %v456
        %477 = vmatprep.subr.mxu0 %v459
        %478 = vmatpush1.msra.mxu0 %v458
        %479 = vmatprep.subr.mxu0 %v461
        %480 = vmatpush1.msra.mxu0 %v460
        %481 = vmatprep.subr.mxu0 %v463
        %482 = vmatpush1.msra.mxu0 %v462
        %483 = vmatprep.subr.mxu0 0.0
        %484 = vmatpush1.msra.mxu0 0.0
        %485 = vmatprep.subr.mxu0 0.0
        %486 = vmatpush1.msra.mxu0 0.0
        %487 = vmatprep.subr.mxu0 0.0
        %488 = vmatpush1.msra.mxu0 0.0
        %489 = vmatprep.subr.mxu0 0.0
        %490 = vmatpush1.msra.mxu0 0.0
        %491 = vmatprep.subr.mxu0 0.0
        %492 = vmatpush1.msra.mxu0 0.0
        %493 = vmatprep.subr.mxu0 0.0
        %494 = vmatpush1.msra.mxu0 0.0
        %495 = vmatprep.subr.mxu0 0.0
        %496 = vmatpush1.msra.mxu0 0.0
        %497 = vmatprep.subr.mxu0 0.0
        %498 = vmatpush1.msra.mxu0 0.0
        %499 = vmatprep.subr.mxu0 0.0
        %500 = vmatpush1.msra.mxu0 0.0
        %501 = vmatprep.subr.mxu0 0.0
        %502 = vmatpush1.msra.mxu0 0.0
        %503 = vmatprep.subr.mxu0 0.0
        %504 = vmatpush1.msra.mxu0 0.0
        %505 = vmatprep.subr.mxu0 0.0
        %506 = vmatpush1.msra.mxu0 0.0
        %507 = vmatprep.subr.mxu0 0.0
        %508 = vmatpush1.msra.mxu0 0.0
        %509 = vmatprep.subr.mxu0 0.0
        %510 = vmatpush1.msra.mxu0 0.0
        %511 = vmatprep.subr.mxu0 0.0
        %512 = vmatpush1.msra.mxu0 0.0
        %513 = vmatprep.subr.mxu0 0.0
        %514 = vmatpush1.msra.mxu0 0.0
        %515 = vmatprep.subr.mxu0 0.0
        %516 = vmatpush1.msra.mxu0 0.0
        %517 = vmatprep.subr.mxu0 0.0
        %518 = vmatpush1.msra.mxu0 0.0
        %519 = vmatprep.subr.mxu0 0.0
        %520 = vmatpush1.msra.mxu0 0.0
        %521 = vmatprep.subr.mxu0 0.0
        %522 = vmatpush1.msra.mxu0 0.0
        %523 = vmatprep.subr.mxu0 0.0
        %524 = vmatpush1.msra.mxu0 0.0
        %525 = vmatprep.subr.mxu0 0.0
        %526 = vmatpush1.msra.mxu0 0.0
        %527 = vmatprep.subr.mxu0 0.0
        %528 = vmatpush1.msra.mxu0 0.0
        %529 = vmatprep.subr.mxu0 0.0
        %530 = vmatpush1.msra.mxu0 0.0
        %531 = vmatprep.subr.mxu0 0.0
        %532 = vmatpush1.msra.mxu0 0.0
        %533 = vmatprep.subr.mxu0 0.0
        %534 = vmatpush1.msra.mxu0 0.0
        %535 = vmatprep.subr.mxu0 0.0
        %536 = vmatpush1.msra.mxu0 0.0
        %537 = vmatprep.subr.mxu0 0.0
        %538 = vmatpush1.msra.mxu0 0.0
        %539 = vmatprep.mubr.f32.mxu0 0.0
        %540 = vmatmul.mubr.f32.gmra.mrb[0].mxu0 %v473
        %v541 = vpop.f32.mrb[0].mxu0
        %v542 = vadd.f32 %v469, %v541
        %v543 = vpop.f32.mrb[0].mxu0
        %v544 = vadd.f32 %v469, %v543
        %545 = vdwg.mxu0
        %v547 = vadd.f32 %v542, %v254
        %v548 = vadd.f32 %v544, %v284
        %v551 = vcombine.low %v547, %v548
        %553 = vst [vmem:[%s242] sm:$0xff] %v551
        %s554 = sand.u32 %s153, 1
        %s555 = scalar_lea.sflag [#allocation3], %s554
        %s556 = sand.u32 %s153, 1
        %s557 = smul.addr %s556, 8
        %s558 = scalar_lea.vmem [#allocation2], %s557
        // Predicated region
        $region41: #{tpu_custom_call.1} parent=39 // pred_check
          %p559 = pneg %p163
        $region42: #{tpu_custom_call.1} parent=39 // pred_check_branch
          %561 = sbr.rel (%p559) target = $region44
        $region43: #{tpu_custom_call.1} parent=39 // pred_region
          %s562 = smul.u32 2, %s24
          %s564 = ssub.s32 128, 128
          %565 = vsyncadd %s555, %s564
          %s566 = smul.addr %s23, 2
          %s567 = sadd.s32 %s562, %s566
          %s568 = smul.addr %s567, 64
          %s569 = scalar_lea.hbm %s5, %s568
          %s571 = sshll.u32 %s558, 4
          %s572 = int_to_ptr.vmem [resolvable:$true] %s571
          %574 = dma.vmem_to_hbm [thread:$0]  %s572, 128, %s569, %s555
        $region44: #{tpu_custom_call.1} parent=39 // pred_fallthru
          _
      $region40: #{tpu_custom_call.1} parent=5 // pred_fallthru
        _
      %p575 = scmp.le.s32.totalorder 2, %s14
      // Predicated region
      $region45: #{tpu_custom_call.1} parent=5 // pred_check
        %p576 = pneg %p575
      $region46: #{tpu_custom_call.1} parent=5 // pred_check_branch
        %578 = sbr.rel (%p576) target = $region48
      $region47: #{tpu_custom_call.1} parent=5 // pred_region
        %s579 = ssub.s32 %s14, 2
        // Predicated region
        $region49: #{tpu_custom_call.1} parent=47 // pred_check
          %p580 = pneg %p169
        $region50: #{tpu_custom_call.1} parent=47 // pred_check_branch
          %582 = sbr.rel (%p580) target = $region52
        $region51: #{tpu_custom_call.1} parent=47 // pred_region
          %s583 = sand.u32 %s154, 1
          %s584 = scalar_lea.sflag [#allocation3], %s583
          %s585 = sand.u32 %s154, 1
          %s586 = smul.addr %s585, 8
          %s587 = scalar_lea.vmem [#allocation2], %s586
          %588 = dma.done %s584, 128
        $region52: #{tpu_custom_call.1} parent=47 // pred_fallthru
          _
      $region48: #{tpu_custom_call.1} parent=5 // pred_fallthru
        _
    $region6: #{tpu_custom_call.1} parent=1 // loop_footer
      %s18 = sadd.s32 1, %s14
    $region7: #{tpu_custom_call.1} parent=1 // loop_footer_branch
      %13 = sbr.rel target = $region3
    $region8: #{tpu_custom_call.1} parent=1 // loop_exit
      _
    %589 = vsyncpa [#allocation3], 1
    %s590 = scalar_lea.sflag [#allocation3], 1
    %591 = vsyncpa %s590, 1

</llo_original>
